<compile_context>
chip_gen: v6e
topology: v6e:2x2x1
jax: 0.10.0
libtpu: 0.0.40
codegen_flags: <defaults>
</compile_context>

<pallas_src>
import functools

import jax
import jax.numpy as jnp
from jax.experimental import pallas as pl
from jax.experimental.pallas import tpu as pltpu


def _round_up(x: int, m: int) -> int:
    return ((x + m - 1) // m) * m


def temporal_mlp_kernel(t_ref, w1_ref, b1_ref, w2_ref, b2_ref, w3_ref, b3_ref,
                        o_ref):
    """Whole forward pass for one batch tile, all operands resident in VMEM."""
    t = t_ref[...]                                   # (tb, 1) f32

    # layer 1: Linear(1 -> H) + tanh.  K=1 contraction == broadcast outer
    # product -> VPU (VALU) multiply-add; tanh goes to the EUP.
    h = jnp.tanh(t * w1_ref[...] + b1_ref[...])      # (tb, H)

    # layer 2: Linear(H -> H) + tanh  (MXU matmul, f32 accumulation)
    h = jnp.dot(h, w2_ref[...], preferred_element_type=jnp.float32)
    h = jnp.tanh(h + b2_ref[...])                    # (tb, H)

    # output layer: Linear(H -> R_pad), no activation.  R is zero-padded to a
    # full 128-lane width so this store is lane-dense (no masked vst).
    out = jnp.dot(h, w3_ref[...], preferred_element_type=jnp.float32)
    o_ref[...] = (out + b3_ref[...]).astype(o_ref.dtype)


@functools.partial(jax.jit, static_argnames=("batch_tile",))
def temporal_network_forward(t, w1, b1, w2, b2, w3, b3, *, batch_tile=None):
    """t: (B, 1) float32 -> (B, num_modes) float32.

    Weights are stored pre-transposed as (in_features, out_features) so the
    kernel computes x @ W + b (== PyTorch x @ W.T + b). Biases are (1, out).
    """
    B = t.shape[0]
    H = w1.shape[1]
    R = w3.shape[1]

    # --- choose a batch tile that amortizes per-step pipeline overhead ------
    # For small batches: one grid step covering the whole (8-padded) batch.
    # For large batches: 512-row tiles (activations 512*H*4 B = 128 KiB at
    # H=64, far below the VMEM limit even on v7x).
    if batch_tile is None:
        batch_tile = min(512, _round_up(B, 8))
    batch_tile = max(8, _round_up(batch_tile, 8))

    B_pad = _round_up(B, batch_tile)
    R_pad = max(128, _round_up(R, 128))   # lane-dense output width

    # --- wrapper-side padding (tiny; folded by XLA under jit) ---------------
    if B_pad != B:
        t = jnp.pad(t, ((0, B_pad - B), (0, 0)))
    if R_pad != R:
        w3 = jnp.pad(w3, ((0, 0), (0, R_pad - R)))
        b3 = jnp.pad(b3, ((0, 0), (0, R_pad - R)))

    grid = (B_pad // batch_tile,)

    # Full-extent blocks for the (small) constant weights/biases; batch tiled.
    def weight_spec(shape):
        return pl.BlockSpec(shape, lambda i: (0, 0))

    flops = 2 * B_pad * (H + H * H + H * R_pad)
    transcendentals = 2 * B_pad * H  # two tanh layers
    bytes_accessed = 4 * (
        B_pad * 1 + B_pad * R_pad                         # t in, padded output
        + 1 * H + H + H * H + H + H * R_pad + R_pad)      # weights + biases

    out_padded = pl.pallas_call(
        temporal_mlp_kernel,
        out_shape=jax.ShapeDtypeStruct((B_pad, R_pad), jnp.float32),
        grid_spec=pltpu.PrefetchScalarGridSpec(
            num_scalar_prefetch=0,
            grid=grid,
            in_specs=[
                pl.BlockSpec((batch_tile, 1), lambda i: (i, 0)),  # t tile
                weight_spec(w1.shape),   # (1, H)
                weight_spec(b1.shape),   # (1, H)
                weight_spec(w2.shape),   # (H, H)
                weight_spec(b2.shape),   # (1, H)
                weight_spec(w3.shape),   # (H, R_pad)
                weight_spec(b3.shape),   # (1, R_pad)
            ],
            out_specs=pl.BlockSpec((batch_tile, R_pad), lambda i: (i, 0)),
        ),
        compiler_params=pltpu.CompilerParams(
            dimension_semantics=("parallel",)),
        cost_estimate=pl.CostEstimate(
            flops=flops,
            transcendentals=transcendentals,
            bytes_accessed=bytes_accessed),
    )(t, w1, b1, w2, b2, w3, b3)

    # slice away batch padding and the lane padding of the output layer
    return out_padded[:B, :R]


def init_params(key, num_modes=4, hidden_dim=64):
    """Xavier-normal weights (zero biases), matching the PyTorch init.

    PyTorch Linear weight is (out, in); xavier_normal std = sqrt(2/(fan_in+fan_out)).
    We store weights transposed as (in, out) for direct x @ W in the kernel.
    """
    k1, k2, k3 = jax.random.split(key, 3)

    def xavier_normal(k, fan_in, fan_out):
        std = jnp.sqrt(2.0 / (fan_in + fan_out)).astype(jnp.float32)
        # sample in (in, out) layout directly (same distribution as transposing)
        return std * jax.random.normal(k, (fan_in, fan_out), dtype=jnp.float32)

    w1 = xavier_normal(k1, 1, hidden_dim)            # (1, H)
    b1 = jnp.zeros((1, hidden_dim), jnp.float32)
    w2 = xavier_normal(k2, hidden_dim, hidden_dim)   # (H, H)
    b2 = jnp.zeros((1, hidden_dim), jnp.float32)
    w3 = xavier_normal(k3, hidden_dim, num_modes)    # (H, R)
    b3 = jnp.zeros((1, num_modes), jnp.float32)
    return w1, b1, w2, b2, w3, b3


def reference_forward(t, w1, b1, w2, b2, w3, b3):
    """Pure-JAX reference for correctness check (full f32 precision)."""
    hp = jax.lax.Precision.HIGHEST
    h = jnp.tanh(jnp.dot(t, w1, precision=hp) + b1)
    h = jnp.tanh(jnp.dot(h, w2, precision=hp) + b2)
    return jnp.dot(h, w3, precision=hp) + b3


if __name__ == "__main__":
    key = jax.random.PRNGKey(0)
    k_params, k_t1, k_t2 = jax.random.split(key, 3)

    num_modes, hidden_dim = 4, 64
    params = init_params(k_params, num_modes=num_modes, hidden_dim=hidden_dim)

    # --- small, sublane-aligned batch ---------------------------------------
    batch = 8
    t = jax.random.uniform(k_t1, (batch, 1), dtype=jnp.float32)
    out = jax.block_until_ready(temporal_network_forward(t, *params))
    ref = reference_forward(t, *params)
    assert out.shape == (batch, num_modes)
    assert jnp.allclose(out, ref, atol=1e-5, rtol=1e-5), "mismatch vs reference"

    # --- odd batch size (exercises the padding path) ------------------------
    batch2 = 10
    t2 = jax.random.uniform(k_t2, (batch2, 1), dtype=jnp.float32)
    out2 = jax.block_until_ready(temporal_network_forward(t2, *params))
    ref2 = reference_forward(t2, *params)
    assert out2.shape == (batch2, num_modes)
    assert jnp.allclose(out2, ref2, atol=1e-5, rtol=1e-5), \
        "mismatch vs reference (odd batch)"

    print("KERNEL_OK")
</pallas_src>

<mosaic_0001>
module attributes {stable_mosaic.version = 11 : i64} {
  func.func @temporal_mlp_kernel(%arg0: i32, %arg1: memref<8x1xf32, #tpu.memory_space<vmem>>, %arg2: memref<1x64xf32, #tpu.memory_space<vmem>>, %arg3: memref<1x64xf32, #tpu.memory_space<vmem>>, %arg4: memref<64x64xf32, #tpu.memory_space<vmem>>, %arg5: memref<1x64xf32, #tpu.memory_space<vmem>>, %arg6: memref<64x128xf32, #tpu.memory_space<vmem>>, %arg7: memref<1x128xf32, #tpu.memory_space<vmem>>, %arg8: memref<8x128xf32, #tpu.memory_space<vmem>>) attributes {dimension_semantics = [#tpu.dimension_semantics<parallel>], iteration_bounds = array<i64: 1>, scalar_prefetch = 0 : i64, scratch_operands = 0 : i64, tpu.core_type = #tpu.core_type<tc>, window_params = [{transform_indices = @transform_0, window_bounds = array<i64: 8, 1>}, {pipeline_mode = #tpu.pipeline_mode<synchronous>, transform_indices = @transform_1, window_bounds = array<i64: 1, 64>}, {pipeline_mode = #tpu.pipeline_mode<synchronous>, transform_indices = @transform_2, window_bounds = array<i64: 1, 64>}, {pipeline_mode = #tpu.pipeline_mode<synchronous>, transform_indices = @transform_3, window_bounds = array<i64: 64, 64>}, {pipeline_mode = #tpu.pipeline_mode<synchronous>, transform_indices = @transform_4, window_bounds = array<i64: 1, 64>}, {pipeline_mode = #tpu.pipeline_mode<synchronous>, transform_indices = @transform_5, window_bounds = array<i64: 64, 128>}, {pipeline_mode = #tpu.pipeline_mode<synchronous>, transform_indices = @transform_6, window_bounds = array<i64: 1, 128>}, {transform_indices = @transform_7, window_bounds = array<i64: 8, 128>}]} {
    %c0 = arith.constant 0 : index
    %c0_0 = arith.constant 0 : index
    %0 = vector.load %arg1[%c0, %c0_0] : memref<8x1xf32, #tpu.memory_space<vmem>>, vector<8x1xf32>
    %c0_1 = arith.constant 0 : index
    %c0_2 = arith.constant 0 : index
    %1 = vector.load %arg2[%c0_1, %c0_2] : memref<1x64xf32, #tpu.memory_space<vmem>>, vector<1x64xf32>
    %2 = vector.broadcast %0 : vector<8x1xf32> to vector<8x64xf32>
    %3 = vector.broadcast %1 : vector<1x64xf32> to vector<8x64xf32>
    %4 = arith.mulf %2, %3 : vector<8x64xf32>
    %c0_3 = arith.constant 0 : index
    %c0_4 = arith.constant 0 : index
    %5 = vector.load %arg3[%c0_3, %c0_4] : memref<1x64xf32, #tpu.memory_space<vmem>>, vector<1x64xf32>
    %6 = vector.broadcast %5 : vector<1x64xf32> to vector<8x64xf32>
    %7 = arith.addf %4, %6 : vector<8x64xf32>
    %8 = math.tanh %7 : vector<8x64xf32>
    %c0_5 = arith.constant 0 : index
    %c0_6 = arith.constant 0 : index
    %9 = vector.load %arg4[%c0_5, %c0_6] : memref<64x64xf32, #tpu.memory_space<vmem>>, vector<64x64xf32>
    %cst = arith.constant dense<0.000000e+00> : vector<8x64xf32>
    %10 = tpu.matmul %8, %9, %cst {dimension_numbers = #tpu.dot_dimension_numbers<[1], [0], [0], [1], [0, 0, 1, 1], [], []>} : vector<8x64xf32>, vector<64x64xf32>, vector<8x64xf32> -> vector<8x64xf32>
    %c0_7 = arith.constant 0 : index
    %c0_8 = arith.constant 0 : index
    %11 = vector.load %arg5[%c0_7, %c0_8] : memref<1x64xf32, #tpu.memory_space<vmem>>, vector<1x64xf32>
    %12 = vector.broadcast %11 : vector<1x64xf32> to vector<8x64xf32>
    %13 = arith.addf %10, %12 : vector<8x64xf32>
    %14 = math.tanh %13 : vector<8x64xf32>
    %c0_9 = arith.constant 0 : index
    %c0_10 = arith.constant 0 : index
    %15 = vector.load %arg6[%c0_9, %c0_10] : memref<64x128xf32, #tpu.memory_space<vmem>>, vector<64x128xf32>
    %cst_11 = arith.constant dense<0.000000e+00> : vector<8x128xf32>
    %16 = tpu.matmul %14, %15, %cst_11 {dimension_numbers = #tpu.dot_dimension_numbers<[1], [0], [0], [1], [0, 0, 1, 1], [], []>} : vector<8x64xf32>, vector<64x128xf32>, vector<8x128xf32> -> vector<8x128xf32>
    %c0_12 = arith.constant 0 : index
    %c0_13 = arith.constant 0 : index
    %17 = vector.load %arg7[%c0_12, %c0_13] : memref<1x128xf32, #tpu.memory_space<vmem>>, vector<1x128xf32>
    %18 = vector.broadcast %17 : vector<1x128xf32> to vector<8x128xf32>
    %19 = arith.addf %16, %18 : vector<8x128xf32>
    %c0_14 = arith.constant 0 : index
    %c0_15 = arith.constant 0 : index
    %20 = vector.load %arg8[%c0_14, %c0_15] : memref<8x128xf32, #tpu.memory_space<vmem>>, vector<8x128xf32>
    tpu.vector_store %arg8[%c0_14, %c0_15], %19 {strides = array<i32>} : memref<8x128xf32, #tpu.memory_space<vmem>>, vector<8x128xf32>,
    return
  }
  func.func @transform_0(%arg0: i32) -> (i32, i32) {
    %c0_i32 = arith.constant 0 : i32
    %c0_i32_0 = arith.constant 0 : i32
    return %arg0, %c0_i32 : i32, i32
  }
  func.func @transform_1(%arg0: i32) -> (i32, i32) {
    %c0_i32 = arith.constant 0 : i32
    %c0_i32_0 = arith.constant 0 : i32
    %c0_i32_1 = arith.constant 0 : i32
    return %c0_i32, %c0_i32_0 : i32, i32
  }
  func.func @transform_2(%arg0: i32) -> (i32, i32) {
    %c0_i32 = arith.constant 0 : i32
    %c0_i32_0 = arith.constant 0 : i32
    %c0_i32_1 = arith.constant 0 : i32
    return %c0_i32, %c0_i32_0 : i32, i32
  }
  func.func @transform_3(%arg0: i32) -> (i32, i32) {
    %c0_i32 = arith.constant 0 : i32
    %c0_i32_0 = arith.constant 0 : i32
    %c0_i32_1 = arith.constant 0 : i32
    return %c0_i32, %c0_i32_0 : i32, i32
  }
  func.func @transform_4(%arg0: i32) -> (i32, i32) {
    %c0_i32 = arith.constant 0 : i32
    %c0_i32_0 = arith.constant 0 : i32
    %c0_i32_1 = arith.constant 0 : i32
    return %c0_i32, %c0_i32_0 : i32, i32
  }
  func.func @transform_5(%arg0: i32) -> (i32, i32) {
    %c0_i32 = arith.constant 0 : i32
    %c0_i32_0 = arith.constant 0 : i32
    %c0_i32_1 = arith.constant 0 : i32
    return %c0_i32, %c0_i32_0 : i32, i32
  }
  func.func @transform_6(%arg0: i32) -> (i32, i32) {
    %c0_i32 = arith.constant 0 : i32
    %c0_i32_0 = arith.constant 0 : i32
    %c0_i32_1 = arith.constant 0 : i32
    return %c0_i32, %c0_i32_0 : i32, i32
  }
  func.func @transform_7(%arg0: i32) -> (i32, i32) {
    %c0_i32 = arith.constant 0 : i32
    %c0_i32_0 = arith.constant 0 : i32
    return %arg0, %c0_i32 : i32, i32
  }
}

</mosaic_0001>

<llo_original>
// kernel: temporal_network_forward.1
$region0: #{temporal_network_forward.1}
  #allocation0 [shape = 'u32[]', space=smem, size = 0x4, offset = 0x4, fixed_abs, tag = 'smem constant byte address 0x4 - core index']
  #allocation1 [shape = 'u32[144,128]{1,0:T(1,128)}', space=vmem, size = 0x12000, scoped, tag = 'internal scratch']
  %s0 = inlined_call_operand.vmem [shape: f32[8,1], index: 0, kind: input, shape index: {}]
  %s1 = inlined_call_operand.vmem [shape: f32[1,64], index: 1, kind: input, shape index: {}]
  %s2 = inlined_call_operand.vmem [shape: f32[1,64], index: 2, kind: input, shape index: {}]
  %s3 = inlined_call_operand.vmem [shape: f32[64,64], index: 3, kind: input, shape index: {}]
  %s4 = inlined_call_operand.vmem [shape: f32[1,64], index: 4, kind: input, shape index: {}]
  %s5 = inlined_call_operand.vmem [shape: f32[64,128], index: 5, kind: input, shape index: {}]
  %s6 = inlined_call_operand.vmem [shape: f32[1,128], index: 6, kind: input, shape index: {}]
  %s7 = inlined_call_operand.vmem [shape: f32[8,128], index: 7, kind: output, shape index: {}]
  %s8 = sld [smem:[#allocation0]]
  $region38: #{temporal_network_forward.1} parent=0
    _
  %s10 = ssub.s32 1, %s8
  %s11 = scalar_select 0, %s10, %s8
  // Predicated region
  $region2: #{temporal_network_forward.1} parent=0 // pred_check
    _
  $region3: #{temporal_network_forward.1} parent=0 // pred_check_branch
    %13 = sbr.rel (0) target = $region5
  $region4: #{temporal_network_forward.1} parent=0 // pred_region
    _
  $region5: #{temporal_network_forward.1} parent=0 // pred_fallthru
    _
  // Predicated region
  $region6: #{temporal_network_forward.1} parent=0 // pred_check
    _
  $region7: #{temporal_network_forward.1} parent=0 // pred_check_branch
    %15 = sbr.rel (0) target = $region9
  $region8: #{temporal_network_forward.1} parent=0 // pred_region
    _
  $region9: #{temporal_network_forward.1} parent=0 // pred_fallthru
    _
  // Predicated region
  $region10: #{temporal_network_forward.1} parent=0 // pred_check
    _
  $region11: #{temporal_network_forward.1} parent=0 // pred_check_branch
    %17 = sbr.rel (0) target = $region13
  $region12: #{temporal_network_forward.1} parent=0 // pred_region
    _
  $region13: #{temporal_network_forward.1} parent=0 // pred_fallthru
    _
  // Predicated region
  $region14: #{temporal_network_forward.1} parent=0 // pred_check
    _
  $region15: #{temporal_network_forward.1} parent=0 // pred_check_branch
    %19 = sbr.rel (0) target = $region17
  $region16: #{temporal_network_forward.1} parent=0 // pred_region
    _
  $region17: #{temporal_network_forward.1} parent=0 // pred_fallthru
    _
  // Predicated region
  $region18: #{temporal_network_forward.1} parent=0 // pred_check
    _
  $region19: #{temporal_network_forward.1} parent=0 // pred_check_branch
    %21 = sbr.rel (0) target = $region21
  $region20: #{temporal_network_forward.1} parent=0 // pred_region
    _
  $region21: #{temporal_network_forward.1} parent=0 // pred_fallthru
    _
  // Predicated region
  $region22: #{temporal_network_forward.1} parent=0 // pred_check
    _
  $region23: #{temporal_network_forward.1} parent=0 // pred_check_branch
    %23 = sbr.rel (0) target = $region25
  $region24: #{temporal_network_forward.1} parent=0 // pred_region
    _
  $region25: #{temporal_network_forward.1} parent=0 // pred_fallthru
    _
  // Predicated region
  $region26: #{temporal_network_forward.1} parent=0 // pred_check
    _
  $region27: #{temporal_network_forward.1} parent=0 // pred_check_branch
    %25 = sbr.rel (0) target = $region29
  $region28: #{temporal_network_forward.1} parent=0 // pred_region
    _
  $region29: #{temporal_network_forward.1} parent=0 // pred_fallthru
    _
  %v26 = vld [vmem:[%s0] sm:$0xff]
  %v27 = vld [vmem:[%s1] sm:$0x1]
  %29 = vset.pattern.permute.xlu0 0
  %30 = vperm.xlu0 %29, %v26
  %v31 = vpop.permute.xlu0 %30
  %v34 = vlaneseq
  %v35 = vshrl.u32 %v34, 7
  %v36 = vsub.s32 0, %v35
  %v37 = vrot.slane %v27, %v36
  %v39 = vmul.f32 %v31, %v37
  %v40 = vld [vmem:[%s2] sm:$0x1]
  %v42 = vlaneseq
  %v43 = vshrl.u32 %v42, 7
  %v44 = vsub.s32 0, %v43
  %v45 = vrot.slane %v40, %v44
  %v47 = vadd.f32 %v39, %v45
  %v48 = vtanh.pop %v47
  %v49 = vld [vmem:[%s3] sm:$0xff]
  %v50 = vld [vmem:[%s3 + $0x8] sm:$0xff]
  %v51 = vld [vmem:[%s3 + $0x10] sm:$0xff]
  %v52 = vld [vmem:[%s3 + $0x18] sm:$0xff]
  %v53 = vld [vmem:[%s3 + $0x20] sm:$0xff]
  %v54 = vld [vmem:[%s3 + $0x28] sm:$0xff]
  %v55 = vld [vmem:[%s3 + $0x30] sm:$0xff]
  %v56 = vld [vmem:[%s3 + $0x38] sm:$0xff]
  %v57 = vld [vmem:[%s4] sm:$0x1]
  %v59 = vlaneseq
  %v60 = vshrl.u32 %v59, 7
  %v61 = vsub.s32 0, %v60
  %v62 = vrot.slane %v57, %v61
  %vm64 = vcmask 523264
  %v66 = vsel %vm64, %v48, 0
  %68 = vmatprep.subr.mxu0 0.0
  %69 = vmatpush1.msra.mxu0 0.0
  %70 = vmatprep.subr.mxu0 0.0
  %71 = vmatpush1.msra.mxu0 0.0
  %72 = vmatprep.subr.mxu0 0.0
  %73 = vmatpush1.msra.mxu0 0.0
  %74 = vmatprep.subr.mxu0 0.0
  %75 = vmatpush1.msra.mxu0 0.0
  %76 = vmatprep.subr.mxu0 0.0
  %77 = vmatpush1.msra.mxu0 0.0
  %78 = vmatprep.subr.mxu0 0.0
  %79 = vmatpush1.msra.mxu0 0.0
  %80 = vmatprep.subr.mxu0 0.0
  %81 = vmatpush1.msra.mxu0 0.0
  %82 = vmatprep.subr.mxu0 0.0
  %83 = vmatpush1.msra.mxu0 0.0
  %84 = vmatprep.subr.mxu0 0.0
  %85 = vmatpush1.msra.mxu0 %v56
  %86 = vmatprep.subr.mxu0 0.0
  %87 = vmatpush1.msra.mxu0 %v55
  %88 = vmatprep.subr.mxu0 0.0
  %89 = vmatpush1.msra.mxu0 %v54
  %90 = vmatprep.subr.mxu0 0.0
  %91 = vmatpush1.msra.mxu0 %v53
  %92 = vmatprep.subr.mxu0 0.0
  %93 = vmatpush1.msra.mxu0 %v52
  %94 = vmatprep.subr.mxu0 0.0
  %95 = vmatpush1.msra.mxu0 %v51
  %96 = vmatprep.subr.mxu0 0.0
  %97 = vmatpush1.msra.mxu0 %v50
  %98 = vmatprep.subr.mxu0 0.0
  %99 = vmatpush1.msra.mxu0 %v49
  %100 = vmatprep.subr.mxu0 0.0
  %101 = vmatpush2.msra.mxu0 0.0
  %102 = vmatprep.subr.mxu0 0.0
  %103 = vmatpush2.msra.mxu0 0.0
  %104 = vmatprep.subr.mxu0 0.0
  %105 = vmatpush2.msra.mxu0 0.0
  %106 = vmatprep.subr.mxu0 0.0
  %107 = vmatpush2.msra.mxu0 0.0
  %108 = vmatprep.subr.mxu0 0.0
  %109 = vmatpush2.msra.mxu0 0.0
  %110 = vmatprep.subr.mxu0 0.0
  %111 = vmatpush2.msra.mxu0 0.0
  %112 = vmatprep.subr.mxu0 0.0
  %113 = vmatpush2.msra.mxu0 0.0
  %114 = vmatprep.subr.mxu0 0.0
  %115 = vmatpush2.msra.mxu0 0.0
  %116 = vmatprep.subr.mxu0 0.0
  %117 = vmatpush2.msra.mxu0 0.0
  %118 = vmatprep.subr.mxu0 0.0
  %119 = vmatpush2.msra.mxu0 0.0
  %120 = vmatprep.subr.mxu0 0.0
  %121 = vmatpush2.msra.mxu0 0.0
  %122 = vmatprep.subr.mxu0 0.0
  %123 = vmatpush2.msra.mxu0 0.0
  %124 = vmatprep.subr.mxu0 0.0
  %125 = vmatpush2.msra.mxu0 0.0
  %126 = vmatprep.subr.mxu0 0.0
  %127 = vmatpush2.msra.mxu0 0.0
  %128 = vmatprep.subr.mxu0 0.0
  %129 = vmatpush2.msra.mxu0 0.0
  %130 = vmatprep.subr.mxu0 0.0
  %131 = vmatpush2.msra.mxu0 0.0
  %132 = vmatprep.mubr.f32.mxu0 0.0
  %133 = vmatmul.mubr.f32.gmra.mxu0 %v66
  %v134 = vpop.f32.mrf.mxu0
  %v135 = vadd.f32 %v62, %v134
  %v136 = vpop.f32.mrf.mxu0
  %137 = vdwg.mxu0
  %v138 = vtanh.pop %v135
  %v139 = vld [vmem:[%s5] sm:$0xff]
  %v140 = vld [vmem:[%s5 + $0x8] sm:$0xff]
  %v141 = vld [vmem:[%s5 + $0x10] sm:$0xff]
  %v142 = vld [vmem:[%s5 + $0x18] sm:$0xff]
  %v143 = vld [vmem:[%s5 + $0x20] sm:$0xff]
  %v144 = vld [vmem:[%s5 + $0x28] sm:$0xff]
  %v145 = vld [vmem:[%s5 + $0x30] sm:$0xff]
  %v146 = vld [vmem:[%s5 + $0x38] sm:$0xff]
  %v147 = vld [vmem:[%s6] sm:$0x1]
  %v149 = vlaneseq
  %v150 = vshrl.u32 %v149, 7
  %v151 = vsub.s32 0, %v150
  %v152 = vrot.slane %v147, %v151
  %v155 = vsel %vm64, %v138, 0
  %157 = vmatprep.subr.mxu0 0.0
  %158 = vmatpush1.msra.mxu0 0.0
  %159 = vmatprep.subr.mxu0 0.0
  %160 = vmatpush1.msra.mxu0 0.0
  %161 = vmatprep.subr.mxu0 0.0
  %162 = vmatpush1.msra.mxu0 0.0
  %163 = vmatprep.subr.mxu0 0.0
  %164 = vmatpush1.msra.mxu0 0.0
  %165 = vmatprep.subr.mxu0 0.0
  %166 = vmatpush1.msra.mxu0 0.0
  %167 = vmatprep.subr.mxu0 0.0
  %168 = vmatpush1.msra.mxu0 0.0
  %169 = vmatprep.subr.mxu0 0.0
  %170 = vmatpush1.msra.mxu0 0.0
  %171 = vmatprep.subr.mxu0 0.0
  %172 = vmatpush1.msra.mxu0 0.0
  %173 = vmatprep.subr.mxu0 0.0
  %174 = vmatpush1.msra.mxu0 %v146
  %175 = vmatprep.subr.mxu0 0.0
  %176 = vmatpush1.msra.mxu0 %v145
  %177 = vmatprep.subr.mxu0 0.0
  %178 = vmatpush1.msra.mxu0 %v144
  %179 = vmatprep.subr.mxu0 0.0
  %180 = vmatpush1.msra.mxu0 %v143
  %181 = vmatprep.subr.mxu0 0.0
  %182 = vmatpush1.msra.mxu0 %v142
  %183 = vmatprep.subr.mxu0 0.0
  %184 = vmatpush1.msra.mxu0 %v141
  %185 = vmatprep.subr.mxu0 0.0
  %186 = vmatpush1.msra.mxu0 %v140
  %187 = vmatprep.subr.mxu0 0.0
  %188 = vmatpush1.msra.mxu0 %v139
  %189 = vmatprep.subr.mxu0 0.0
  %190 = vmatpush2.msra.mxu0 0.0
  %191 = vmatprep.subr.mxu0 0.0
  %192 = vmatpush2.msra.mxu0 0.0
  %193 = vmatprep.subr.mxu0 0.0
  %194 = vmatpush2.msra.mxu0 0.0
  %195 = vmatprep.subr.mxu0 0.0
  %196 = vmatpush2.msra.mxu0 0.0
  %197 = vmatprep.subr.mxu0 0.0
  %198 = vmatpush2.msra.mxu0 0.0
  %199 = vmatprep.subr.mxu0 0.0
  %200 = vmatpush2.msra.mxu0 0.0
  %201 = vmatprep.subr.mxu0 0.0
  %202 = vmatpush2.msra.mxu0 0.0
  %203 = vmatprep.subr.mxu0 0.0
  %204 = vmatpush2.msra.mxu0 0.0
  %205 = vmatprep.subr.mxu0 0.0
  %206 = vmatpush2.msra.mxu0 0.0
  %207 = vmatprep.subr.mxu0 0.0
  %208 = vmatpush2.msra.mxu0 0.0
  %209 = vmatprep.subr.mxu0 0.0
  %210 = vmatpush2.msra.mxu0 0.0
  %211 = vmatprep.subr.mxu0 0.0
  %212 = vmatpush2.msra.mxu0 0.0
  %213 = vmatprep.subr.mxu0 0.0
  %214 = vmatpush2.msra.mxu0 0.0
  %215 = vmatprep.subr.mxu0 0.0
  %216 = vmatpush2.msra.mxu0 0.0
  %217 = vmatprep.subr.mxu0 0.0
  %218 = vmatpush2.msra.mxu0 0.0
  %219 = vmatprep.subr.mxu0 0.0
  %220 = vmatpush2.msra.mxu0 0.0
  %221 = vmatprep.mubr.f32.mxu0 0.0
  %222 = vmatmul.mubr.f32.gmra.mxu0 %v155
  %v223 = vpop.f32.mrf.mxu0
  %v224 = vadd.f32 %v152, %v223
  %v225 = vpop.f32.mrf.mxu0
  %226 = vdwg.mxu0
  %227 = vst [vmem:[%s7] sm:$0xff] %v224
  // Predicated region
  $region30: #{temporal_network_forward.1} parent=0 // pred_check
    _
  $region31: #{temporal_network_forward.1} parent=0 // pred_check_branch
    %229 = sbr.rel (0) target = $region33
  $region32: #{temporal_network_forward.1} parent=0 // pred_region
    _
  $region33: #{temporal_network_forward.1} parent=0 // pred_fallthru
    _
  // Predicated region
  $region34: #{temporal_network_forward.1} parent=0 // pred_check
    _
  $region35: #{temporal_network_forward.1} parent=0 // pred_check_branch
    %231 = sbr.rel (0) target = $region37
  $region36: #{temporal_network_forward.1} parent=0 // pred_region
    _
  $region37: #{temporal_network_forward.1} parent=0 // pred_fallthru
    _

</llo_original>
